<compile_context>
chip_gen: v5e
topology: v5e:2x2
jax: 0.10.0
libtpu: 0.0.40
codegen_flags: <defaults>
</compile_context>

<pallas_src>
import functools

import jax
import jax.numpy as jnp
from jax.experimental import pallas as pl
from jax.experimental.pallas import tpu as pltpu

# ----- model hyper-parameters (small, consistent with the module) -----------
OBS_DIM = 32       # state_shape = (OBS_DIM,)
HDIM = 64          # encoder / actor hidden width
ZS_DIM = 64        # latent zs width
ACT_DIM = 8        # action dimension
ACT_PAD = 128      # lane-dense padded action width (unmasked 128-lane stores)
MAX_ACTION = 1.0
ACTOR_NOISE = 0.2  # actor.noise (exploration std)
ELU_ALPHA = 1.0    # PyTorch F.elu default
NORM_EPS = 1e-8    # AvgL1Norm clamp


def _elu(x):
    return jnp.where(x > 0, x, ELU_ALPHA * (jnp.exp(x) - 1.0))


def _dot_bf16(x, w):
    # bf16 MXU operands, f32 accumulation.
    return jnp.dot(x.astype(jnp.bfloat16), w, preferred_element_type=jnp.float32)


# ----------------------------- Pallas kernel --------------------------------
def _forward(state, noise,
             ew1, eb1, ew2, eb2, ew3, eb3,
             aw1, ab1, aw2, ab2, aw3, ab3):
    # ---- Encoder.zs(state) ----
    h = _elu(_dot_bf16(state, ew1) + eb1)
    h = _elu(_dot_bf16(h, ew2) + eb2)
    zs = _dot_bf16(h, ew3) + eb3
    # AvgL1Norm: x / clamp(mean(|x|, -1, keepdim), min=eps)  (ZS_DIM is unpadded,
    # so the mean divisor is the true latent width)
    denom = jnp.maximum(jnp.mean(jnp.abs(zs), axis=-1, keepdims=True), NORM_EPS)
    zs = zs * pl.reciprocal(denom, approx=True)

    # ---- Actor.predict(zs) ----
    a = jnp.maximum(_dot_bf16(zs, aw1) + ab1, 0.0)
    a = jnp.maximum(_dot_bf16(a, aw2) + ab2, 0.0)
    # aw3 / ab3 are zero-padded to ACT_PAD lanes -> padded lanes are tanh(0) = 0
    action = jnp.tanh(_dot_bf16(a, aw3) + ab3)

    if noise is not None:              # noise already scaled by ACTOR_NOISE, padded
        action = action + noise
    action = jnp.clip(action, -1.0, 1.0)
    if MAX_ACTION != 1.0:
        action = action * MAX_ACTION
    return action


def _mrq_kernel(add_noise, *refs):
    if add_noise:
        state_ref, noise_ref = refs[0], refs[1]
        param_refs = refs[2:14]
        out_ref = refs[14]
        noise = noise_ref[...]
    else:
        state_ref = refs[0]
        param_refs = refs[1:13]
        out_ref = refs[13]
        noise = None
    out_ref[...] = _forward(state_ref[...], noise, *[r[...] for r in param_refs])


# ----------------------------- wrapper ---------------------------------------
def _prep_params(params):
    """Cast weight matrices to bf16 and pad the final actor layer to ACT_PAD lanes."""
    (ew1, eb1, ew2, eb2, ew3, eb3, aw1, ab1, aw2, ab2, aw3, ab3) = params
    bf = lambda w: w.astype(jnp.bfloat16)
    aw3p = jnp.zeros((HDIM, ACT_PAD), jnp.float32).at[:, :ACT_DIM].set(aw3)
    ab3p = jnp.zeros((1, ACT_PAD), jnp.float32).at[:, :ACT_DIM].set(ab3[0])
    return (bf(ew1), eb1, bf(ew2), eb2, bf(ew3), eb3,
            bf(aw1), ab1, bf(aw2), ab2, bf(aw3p), ab3p)


def _choose_tile(b_pad, max_tile=1024):
    # Largest multiple-of-16 divisor of b_pad not exceeding max_tile.
    tile = max(16, min(b_pad, max_tile) - (min(b_pad, max_tile) % 16))
    while b_pad % tile:
        tile -= 16
    return tile


def mrq_step(obs, params, noise=None):
    """obs: (B, OBS_DIM) float32; noise: None (deterministic) or (B, ACT_DIM) N(0,1).

    Returns the flattened action vector (B * ACT_DIM,), matching
    `action.clamp(-1, 1).flatten() * max_action`.
    """
    state = obs.reshape(-1, OBS_DIM).astype(jnp.float32)   # reshape(-1, *state_shape)
    B = state.shape[0]
    Bp = ((B + 15) // 16) * 16                             # bf16 sublane packing
    if Bp != B:
        state = jnp.pad(state, ((0, Bp - B), (0, 0)))

    tile = _choose_tile(Bp)                                # whole batch per block at small B
    grid = (Bp // tile,)

    row_map = lambda i: (i, 0)
    const_map = lambda i: (0, 0)

    params_k = _prep_params(params)
    param_specs = [pl.BlockSpec(p.shape, const_map) for p in params_k]

    if noise is None:
        kernel = functools.partial(_mrq_kernel, False)
        in_specs = [pl.BlockSpec((tile, OBS_DIM), row_map)] + param_specs
        args = (state,) + params_k
    else:
        # Pre-scale by actor.noise and pad to the lane-dense action slab.
        noise_p = jnp.zeros((Bp, ACT_PAD), jnp.float32)
        noise_p = noise_p.at[:B, :ACT_DIM].set(noise.astype(jnp.float32) * ACTOR_NOISE)
        kernel = functools.partial(_mrq_kernel, True)
        in_specs = [pl.BlockSpec((tile, OBS_DIM), row_map),
                    pl.BlockSpec((tile, ACT_PAD), row_map)] + param_specs
        args = (state, noise_p) + params_k

    out = pl.pallas_call(
        kernel,
        grid=grid,
        in_specs=in_specs,
        out_specs=pl.BlockSpec((tile, ACT_PAD), row_map),
        out_shape=jax.ShapeDtypeStruct((Bp, ACT_PAD), jnp.float32),
        compiler_params=pltpu.CompilerParams(
            dimension_semantics=("parallel",)),
    )(*args)

    return out[:B, :ACT_DIM].reshape(-1)                   # .flatten()


# ----------------------------- parameter init -------------------------------
def _linear_params(key, fan_in, fan_out):
    # PyTorch nn.Linear default init: U(-1/sqrt(fan_in), 1/sqrt(fan_in))
    kw, kb = jax.random.split(key)
    bound = 1.0 / float(fan_in) ** 0.5
    w = jax.random.uniform(kw, (fan_in, fan_out), jnp.float32, -bound, bound)
    b = jax.random.uniform(kb, (1, fan_out), jnp.float32, -bound, bound)
    return w, b


def init_params(key):
    ks = jax.random.split(key, 6)
    ew1, eb1 = _linear_params(ks[0], OBS_DIM, HDIM)
    ew2, eb2 = _linear_params(ks[1], HDIM, HDIM)
    ew3, eb3 = _linear_params(ks[2], HDIM, ZS_DIM)
    aw1, ab1 = _linear_params(ks[3], ZS_DIM, HDIM)
    aw2, ab2 = _linear_params(ks[4], HDIM, HDIM)
    aw3, ab3 = _linear_params(ks[5], HDIM, ACT_DIM)
    return (ew1, eb1, ew2, eb2, ew3, eb3, aw1, ab1, aw2, ab2, aw3, ab3)


# ----------------------------- pure-JAX reference (f32) ----------------------
def reference_step(obs, noise, params):
    (ew1, eb1, ew2, eb2, ew3, eb3, aw1, ab1, aw2, ab2, aw3, ab3) = params
    x = obs.reshape(-1, OBS_DIM)
    h = _elu(x @ ew1 + eb1)
    h = _elu(h @ ew2 + eb2)
    zs = h @ ew3 + eb3
    zs = zs / jnp.maximum(jnp.mean(jnp.abs(zs), axis=-1, keepdims=True), NORM_EPS)
    a = jnp.maximum(zs @ aw1 + ab1, 0.0)
    a = jnp.maximum(a @ aw2 + ab2, 0.0)
    action = jnp.tanh(a @ aw3 + ab3)
    if noise is not None:
        action = action + noise * ACTOR_NOISE
    return (jnp.clip(action, -1.0, 1.0) * MAX_ACTION).reshape(-1)


# ----------------------------- main ------------------------------------------
if __name__ == "__main__":
    key = jax.random.PRNGKey(0)
    k_param, k_obs, k_noise = jax.random.split(key, 3)

    B = 16
    obs = jax.random.normal(k_obs, (B, OBS_DIM), jnp.float32)
    params = init_params(k_param)

    # deterministic=True path (no exploration noise; no noise DMA stream)
    act_det = mrq_step(obs, params, noise=None)
    jax.block_until_ready(act_det)
    ref_det = reference_step(obs, None, params)
    # bf16 matmul operands + approx reciprocal -> relaxed tolerance vs f32 reference
    if not jnp.allclose(act_det, ref_det, atol=3e-2, rtol=3e-2):
        raise AssertionError("Pallas kernel mismatch vs JAX reference (deterministic)")

    # deterministic=False path (gaussian noise drawn outside the kernel)
    noise = jax.random.normal(k_noise, (B, ACT_DIM), jnp.float32)
    act_noisy = mrq_step(obs, params, noise=noise)
    jax.block_until_ready(act_noisy)
    ref_noisy = reference_step(obs, noise, params)
    if not jnp.allclose(act_noisy, ref_noisy, atol=3e-2, rtol=3e-2):
        raise AssertionError("Pallas kernel mismatch vs JAX reference (noisy)")

    print("KERNEL_OK")
</pallas_src>

<mosaic_0001>
module attributes {stable_mosaic.version = 11 : i64} {
  func.func @_mrq_kernel(%arg0: i32, %arg1: memref<16x32xf32, #tpu.memory_space<vmem>>, %arg2: memref<32x64xbf16, #tpu.memory_space<vmem>>, %arg3: memref<1x64xf32, #tpu.memory_space<vmem>>, %arg4: memref<64x64xbf16, #tpu.memory_space<vmem>>, %arg5: memref<1x64xf32, #tpu.memory_space<vmem>>, %arg6: memref<64x64xbf16, #tpu.memory_space<vmem>>, %arg7: memref<1x64xf32, #tpu.memory_space<vmem>>, %arg8: memref<64x64xbf16, #tpu.memory_space<vmem>>, %arg9: memref<1x64xf32, #tpu.memory_space<vmem>>, %arg10: memref<64x64xbf16, #tpu.memory_space<vmem>>, %arg11: memref<1x64xf32, #tpu.memory_space<vmem>>, %arg12: memref<64x128xbf16, #tpu.memory_space<vmem>>, %arg13: memref<1x128xf32, #tpu.memory_space<vmem>>, %arg14: memref<16x128xf32, #tpu.memory_space<vmem>>) attributes {dimension_semantics = [#tpu.dimension_semantics<parallel>], iteration_bounds = array<i64: 1>, scalar_prefetch = 0 : i64, scratch_operands = 0 : i64, tpu.core_type = #tpu.core_type<tc>, window_params = [{transform_indices = @transform_0, window_bounds = array<i64: 16, 32>}, {pipeline_mode = #tpu.pipeline_mode<synchronous>, transform_indices = @transform_1, window_bounds = array<i64: 32, 64>}, {pipeline_mode = #tpu.pipeline_mode<synchronous>, transform_indices = @transform_2, window_bounds = array<i64: 1, 64>}, {pipeline_mode = #tpu.pipeline_mode<synchronous>, transform_indices = @transform_3, window_bounds = array<i64: 64, 64>}, {pipeline_mode = #tpu.pipeline_mode<synchronous>, transform_indices = @transform_4, window_bounds = array<i64: 1, 64>}, {pipeline_mode = #tpu.pipeline_mode<synchronous>, transform_indices = @transform_5, window_bounds = array<i64: 64, 64>}, {pipeline_mode = #tpu.pipeline_mode<synchronous>, transform_indices = @transform_6, window_bounds = array<i64: 1, 64>}, {pipeline_mode = #tpu.pipeline_mode<synchronous>, transform_indices = @transform_7, window_bounds = array<i64: 64, 64>}, {pipeline_mode = #tpu.pipeline_mode<synchronous>, transform_indices = @transform_8, window_bounds = array<i64: 1, 64>}, {pipeline_mode = #tpu.pipeline_mode<synchronous>, transform_indices = @transform_9, window_bounds = array<i64: 64, 64>}, {pipeline_mode = #tpu.pipeline_mode<synchronous>, transform_indices = @transform_10, window_bounds = array<i64: 1, 64>}, {pipeline_mode = #tpu.pipeline_mode<synchronous>, transform_indices = @transform_11, window_bounds = array<i64: 64, 128>}, {pipeline_mode = #tpu.pipeline_mode<synchronous>, transform_indices = @transform_12, window_bounds = array<i64: 1, 128>}, {transform_indices = @transform_13, window_bounds = array<i64: 16, 128>}]} {
    %c0 = arith.constant 0 : index
    %c0_0 = arith.constant 0 : index
    %0 = vector.load %arg1[%c0, %c0_0] : memref<16x32xf32, #tpu.memory_space<vmem>>, vector<16x32xf32>
    %c0_1 = arith.constant 0 : index
    %c0_2 = arith.constant 0 : index
    %1 = vector.load %arg2[%c0_1, %c0_2] : memref<32x64xbf16, #tpu.memory_space<vmem>>, vector<32x64xbf16>
    %c0_3 = arith.constant 0 : index
    %c0_4 = arith.constant 0 : index
    %2 = vector.load %arg3[%c0_3, %c0_4] : memref<1x64xf32, #tpu.memory_space<vmem>>, vector<1x64xf32>
    %c0_5 = arith.constant 0 : index
    %c0_6 = arith.constant 0 : index
    %3 = vector.load %arg4[%c0_5, %c0_6] : memref<64x64xbf16, #tpu.memory_space<vmem>>, vector<64x64xbf16>
    %c0_7 = arith.constant 0 : index
    %c0_8 = arith.constant 0 : index
    %4 = vector.load %arg5[%c0_7, %c0_8] : memref<1x64xf32, #tpu.memory_space<vmem>>, vector<1x64xf32>
    %c0_9 = arith.constant 0 : index
    %c0_10 = arith.constant 0 : index
    %5 = vector.load %arg6[%c0_9, %c0_10] : memref<64x64xbf16, #tpu.memory_space<vmem>>, vector<64x64xbf16>
    %c0_11 = arith.constant 0 : index
    %c0_12 = arith.constant 0 : index
    %6 = vector.load %arg7[%c0_11, %c0_12] : memref<1x64xf32, #tpu.memory_space<vmem>>, vector<1x64xf32>
    %c0_13 = arith.constant 0 : index
    %c0_14 = arith.constant 0 : index
    %7 = vector.load %arg8[%c0_13, %c0_14] : memref<64x64xbf16, #tpu.memory_space<vmem>>, vector<64x64xbf16>
    %c0_15 = arith.constant 0 : index
    %c0_16 = arith.constant 0 : index
    %8 = vector.load %arg9[%c0_15, %c0_16] : memref<1x64xf32, #tpu.memory_space<vmem>>, vector<1x64xf32>
    %c0_17 = arith.constant 0 : index
    %c0_18 = arith.constant 0 : index
    %9 = vector.load %arg10[%c0_17, %c0_18] : memref<64x64xbf16, #tpu.memory_space<vmem>>, vector<64x64xbf16>
    %c0_19 = arith.constant 0 : index
    %c0_20 = arith.constant 0 : index
    %10 = vector.load %arg11[%c0_19, %c0_20] : memref<1x64xf32, #tpu.memory_space<vmem>>, vector<1x64xf32>
    %c0_21 = arith.constant 0 : index
    %c0_22 = arith.constant 0 : index
    %11 = vector.load %arg12[%c0_21, %c0_22] : memref<64x128xbf16, #tpu.memory_space<vmem>>, vector<64x128xbf16>
    %c0_23 = arith.constant 0 : index
    %c0_24 = arith.constant 0 : index
    %12 = vector.load %arg13[%c0_23, %c0_24] : memref<1x128xf32, #tpu.memory_space<vmem>>, vector<1x128xf32>
    %13 = arith.truncf %0 : vector<16x32xf32> to vector<16x32xbf16>
    %cst = arith.constant dense<0.000000e+00> : vector<16x64xf32>
    %14 = tpu.matmul %13, %1, %cst {dimension_numbers = #tpu.dot_dimension_numbers<[1], [0], [0], [1], [0, 0, 1, 1], [], []>} : vector<16x32xbf16>, vector<32x64xbf16>, vector<16x64xf32> -> vector<16x64xf32>
    %15 = vector.broadcast %2 : vector<1x64xf32> to vector<16x64xf32>
    %16 = arith.addf %14, %15 : vector<16x64xf32>
    %cst_25 = arith.constant 0.000000e+00 : f32
    %17 = vector.broadcast %cst_25 : f32 to vector<16x64xf32>
    %18 = arith.cmpf ogt, %16, %17 : vector<16x64xf32>
    %19 = math.exp %16 : vector<16x64xf32>
    %cst_26 = arith.constant 1.000000e+00 : f32
    %20 = vector.broadcast %cst_26 : f32 to vector<16x64xf32>
    %21 = arith.subf %19, %20 : vector<16x64xf32>
    %cst_27 = arith.constant 1.000000e+00 : f32
    %22 = vector.broadcast %cst_27 : f32 to vector<16x64xf32>
    %23 = arith.mulf %22, %21 : vector<16x64xf32>
    %24 = arith.select %18, %16, %23 : vector<16x64xi1>, vector<16x64xf32>
    %25 = arith.truncf %24 : vector<16x64xf32> to vector<16x64xbf16>
    %cst_28 = arith.constant dense<0.000000e+00> : vector<16x64xf32>
    %26 = tpu.matmul %25, %3, %cst_28 {dimension_numbers = #tpu.dot_dimension_numbers<[1], [0], [0], [1], [0, 0, 1, 1], [], []>} : vector<16x64xbf16>, vector<64x64xbf16>, vector<16x64xf32> -> vector<16x64xf32>
    %27 = vector.broadcast %4 : vector<1x64xf32> to vector<16x64xf32>
    %28 = arith.addf %26, %27 : vector<16x64xf32>
    %cst_29 = arith.constant 0.000000e+00 : f32
    %29 = vector.broadcast %cst_29 : f32 to vector<16x64xf32>
    %30 = arith.cmpf ogt, %28, %29 : vector<16x64xf32>
    %31 = math.exp %28 : vector<16x64xf32>
    %cst_30 = arith.constant 1.000000e+00 : f32
    %32 = vector.broadcast %cst_30 : f32 to vector<16x64xf32>
    %33 = arith.subf %31, %32 : vector<16x64xf32>
    %cst_31 = arith.constant 1.000000e+00 : f32
    %34 = vector.broadcast %cst_31 : f32 to vector<16x64xf32>
    %35 = arith.mulf %34, %33 : vector<16x64xf32>
    %36 = arith.select %30, %28, %35 : vector<16x64xi1>, vector<16x64xf32>
    %37 = arith.truncf %36 : vector<16x64xf32> to vector<16x64xbf16>
    %cst_32 = arith.constant dense<0.000000e+00> : vector<16x64xf32>
    %38 = tpu.matmul %37, %5, %cst_32 {dimension_numbers = #tpu.dot_dimension_numbers<[1], [0], [0], [1], [0, 0, 1, 1], [], []>} : vector<16x64xbf16>, vector<64x64xbf16>, vector<16x64xf32> -> vector<16x64xf32>
    %39 = vector.broadcast %6 : vector<1x64xf32> to vector<16x64xf32>
    %40 = arith.addf %38, %39 : vector<16x64xf32>
    %41 = math.absf %40 : vector<16x64xf32>
    %cst_33 = arith.constant dense<0.000000e+00> : vector<16xf32>
    %42 = vector.multi_reduction <add>, %41, %cst_33 [1] : vector<16x64xf32> to vector<16xf32>
    %43 = vector.shape_cast %42 : vector<16xf32> to vector<16x1xf32>
    %cst_34 = arith.constant 6.400000e+01 : f32
    %44 = vector.broadcast %cst_34 : f32 to vector<16x1xf32>
    %45 = arith.divf %43, %44 : vector<16x1xf32>
    %cst_35 = arith.constant 9.99999993E-9 : f32
    %46 = vector.broadcast %cst_35 : f32 to vector<16x1xf32>
    %47 = arith.maximumf %45, %46 : vector<16x1xf32>
    %48 = tpu.reciprocal %47 {approx = true} : vector<16x1xf32> -> vector<16x1xf32>
    %49 = vector.broadcast %48 : vector<16x1xf32> to vector<16x64xf32>
    %50 = arith.mulf %40, %49 : vector<16x64xf32>
    %51 = arith.truncf %50 : vector<16x64xf32> to vector<16x64xbf16>
    %cst_36 = arith.constant dense<0.000000e+00> : vector<16x64xf32>
    %52 = tpu.matmul %51, %7, %cst_36 {dimension_numbers = #tpu.dot_dimension_numbers<[1], [0], [0], [1], [0, 0, 1, 1], [], []>} : vector<16x64xbf16>, vector<64x64xbf16>, vector<16x64xf32> -> vector<16x64xf32>
    %53 = vector.broadcast %8 : vector<1x64xf32> to vector<16x64xf32>
    %54 = arith.addf %52, %53 : vector<16x64xf32>
    %cst_37 = arith.constant 0.000000e+00 : f32
    %55 = vector.broadcast %cst_37 : f32 to vector<16x64xf32>
    %56 = arith.maximumf %54, %55 : vector<16x64xf32>
    %57 = arith.truncf %56 : vector<16x64xf32> to vector<16x64xbf16>
    %cst_38 = arith.constant dense<0.000000e+00> : vector<16x64xf32>
    %58 = tpu.matmul %57, %9, %cst_38 {dimension_numbers = #tpu.dot_dimension_numbers<[1], [0], [0], [1], [0, 0, 1, 1], [], []>} : vector<16x64xbf16>, vector<64x64xbf16>, vector<16x64xf32> -> vector<16x64xf32>
    %59 = vector.broadcast %10 : vector<1x64xf32> to vector<16x64xf32>
    %60 = arith.addf %58, %59 : vector<16x64xf32>
    %cst_39 = arith.constant 0.000000e+00 : f32
    %61 = vector.broadcast %cst_39 : f32 to vector<16x64xf32>
    %62 = arith.maximumf %60, %61 : vector<16x64xf32>
    %63 = arith.truncf %62 : vector<16x64xf32> to vector<16x64xbf16>
    %cst_40 = arith.constant dense<0.000000e+00> : vector<16x128xf32>
    %64 = tpu.matmul %63, %11, %cst_40 {dimension_numbers = #tpu.dot_dimension_numbers<[1], [0], [0], [1], [0, 0, 1, 1], [], []>} : vector<16x64xbf16>, vector<64x128xbf16>, vector<16x128xf32> -> vector<16x128xf32>
    %65 = vector.broadcast %12 : vector<1x128xf32> to vector<16x128xf32>
    %66 = arith.addf %64, %65 : vector<16x128xf32>
    %67 = math.tanh %66 : vector<16x128xf32>
    %cst_41 = arith.constant -1.000000e+00 : f32
    %cst_42 = arith.constant 1.000000e+00 : f32
    %68 = vector.broadcast %cst_41 : f32 to vector<16x128xf32>
    %69 = arith.maximumf %68, %67 : vector<16x128xf32>
    %70 = vector.broadcast %cst_42 : f32 to vector<16x128xf32>
    %71 = arith.minimumf %70, %69 : vector<16x128xf32>
    %c0_43 = arith.constant 0 : index
    %c0_44 = arith.constant 0 : index
    %72 = vector.load %arg14[%c0_43, %c0_44] : memref<16x128xf32, #tpu.memory_space<vmem>>, vector<16x128xf32>
    tpu.vector_store %arg14[%c0_43, %c0_44], %71 {strides = array<i32>} : memref<16x128xf32, #tpu.memory_space<vmem>>, vector<16x128xf32>,
    return
  }
  func.func @transform_0(%arg0: i32) -> (i32, i32) {
    %c0_i32 = arith.constant 0 : i32
    %c0_i32_0 = arith.constant 0 : i32
    return %arg0, %c0_i32 : i32, i32
  }
  func.func @transform_1(%arg0: i32) -> (i32, i32) {
    %c0_i32 = arith.constant 0 : i32
    %c0_i32_0 = arith.constant 0 : i32
    %c0_i32_1 = arith.constant 0 : i32
    return %c0_i32, %c0_i32_0 : i32, i32
  }
  func.func @transform_2(%arg0: i32) -> (i32, i32) {
    %c0_i32 = arith.constant 0 : i32
    %c0_i32_0 = arith.constant 0 : i32
    %c0_i32_1 = arith.constant 0 : i32
    return %c0_i32, %c0_i32_0 : i32, i32
  }
  func.func @transform_3(%arg0: i32) -> (i32, i32) {
    %c0_i32 = arith.constant 0 : i32
    %c0_i32_0 = arith.constant 0 : i32
    %c0_i32_1 = arith.constant 0 : i32
    return %c0_i32, %c0_i32_0 : i32, i32
  }
  func.func @transform_4(%arg0: i32) -> (i32, i32) {
    %c0_i32 = arith.constant 0 : i32
    %c0_i32_0 = arith.constant 0 : i32
    %c0_i32_1 = arith.constant 0 : i32
    return %c0_i32, %c0_i32_0 : i32, i32
  }
  func.func @transform_5(%arg0: i32) -> (i32, i32) {
    %c0_i32 = arith.constant 0 : i32
    %c0_i32_0 = arith.constant 0 : i32
    %c0_i32_1 = arith.constant 0 : i32
    return %c0_i32, %c0_i32_0 : i32, i32
  }
  func.func @transform_6(%arg0: i32) -> (i32, i32) {
    %c0_i32 = arith.constant 0 : i32
    %c0_i32_0 = arith.constant 0 : i32
    %c0_i32_1 = arith.constant 0 : i32
    return %c0_i32, %c0_i32_0 : i32, i32
  }
  func.func @transform_7(%arg0: i32) -> (i32, i32) {
    %c0_i32 = arith.constant 0 : i32
    %c0_i32_0 = arith.constant 0 : i32
    %c0_i32_1 = arith.constant 0 : i32
    return %c0_i32, %c0_i32_0 : i32, i32
  }
  func.func @transform_8(%arg0: i32) -> (i32, i32) {
    %c0_i32 = arith.constant 0 : i32
    %c0_i32_0 = arith.constant 0 : i32
    %c0_i32_1 = arith.constant 0 : i32
    return %c0_i32, %c0_i32_0 : i32, i32
  }
  func.func @transform_9(%arg0: i32) -> (i32, i32) {
    %c0_i32 = arith.constant 0 : i32
    %c0_i32_0 = arith.constant 0 : i32
    %c0_i32_1 = arith.constant 0 : i32
    return %c0_i32, %c0_i32_0 : i32, i32
  }
  func.func @transform_10(%arg0: i32) -> (i32, i32) {
    %c0_i32 = arith.constant 0 : i32
    %c0_i32_0 = arith.constant 0 : i32
    %c0_i32_1 = arith.constant 0 : i32
    return %c0_i32, %c0_i32_0 : i32, i32
  }
  func.func @transform_11(%arg0: i32) -> (i32, i32) {
    %c0_i32 = arith.constant 0 : i32
    %c0_i32_0 = arith.constant 0 : i32
    %c0_i32_1 = arith.constant 0 : i32
    return %c0_i32, %c0_i32_0 : i32, i32
  }
  func.func @transform_12(%arg0: i32) -> (i32, i32) {
    %c0_i32 = arith.constant 0 : i32
    %c0_i32_0 = arith.constant 0 : i32
    %c0_i32_1 = arith.constant 0 : i32
    return %c0_i32, %c0_i32_0 : i32, i32
  }
  func.func @transform_13(%arg0: i32) -> (i32, i32) {
    %c0_i32 = arith.constant 0 : i32
    %c0_i32_0 = arith.constant 0 : i32
    return %arg0, %c0_i32 : i32, i32
  }
}

</mosaic_0001>

<llo_original>
// kernel: tpu_custom_call.1
$region0: #{tpu_custom_call.1}
  #allocation0 [shape = 'u32[]', space=smem, size = 0x4, offset = 0x4, fixed_abs, tag = 'smem constant byte address 0x4 - core index']
  #allocation1 [shape = 'u32[72,128]{1,0:T(1,128)}', space=vmem, size = 0x9000, scoped, tag = 'internal scratch']
  %s0 = inlined_call_operand.hbm [shape: f32[16,32], index: 0, kind: input, shape index: {}]
  %s1 = inlined_call_operand.hbm [shape: bf16[32,64], index: 1, kind: input, shape index: {}]
  %s2 = inlined_call_operand.vmem [shape: f32[1,64], index: 2, kind: input, shape index: {}]
  %s3 = inlined_call_operand.hbm [shape: bf16[64,64], index: 3, kind: input, shape index: {}]
  %s4 = inlined_call_operand.vmem [shape: f32[1,64], index: 4, kind: input, shape index: {}]
  %s5 = inlined_call_operand.hbm [shape: bf16[64,64], index: 5, kind: input, shape index: {}]
  %s6 = inlined_call_operand.vmem [shape: f32[1,64], index: 6, kind: input, shape index: {}]
  %s7 = inlined_call_operand.hbm [shape: bf16[64,64], index: 7, kind: input, shape index: {}]
  %s8 = inlined_call_operand.vmem [shape: f32[1,64], index: 8, kind: input, shape index: {}]
  %s9 = inlined_call_operand.hbm [shape: bf16[64,64], index: 9, kind: input, shape index: {}]
  %s10 = inlined_call_operand.vmem [shape: f32[1,64], index: 10, kind: input, shape index: {}]
  %s11 = inlined_call_operand.hbm [shape: bf16[64,128], index: 11, kind: input, shape index: {}]
  %s12 = inlined_call_operand.vmem [shape: f32[1,128], index: 12, kind: input, shape index: {}]
  %s13 = inlined_call_operand.hbm [shape: f32[16,128], index: 13, kind: output, shape index: {}]
  %s14 = sld [smem:[#allocation0]]
  $region90: #{tpu_custom_call.1} parent=0
    _
  %s16 = ssub.s32 1, %s14
  %s17 = scalar_select 0, %s16, %s14
  $region1: #{tpu_custom_call.1} parent=0
    #allocation2 [shape = 'u8[8192]{0}', space=vmem, size = 0x2000, scoped, tag = 'input window, operand 0, single buffered']
    #allocation3 [shape = 's32[1]{0}', space=sflag, size = 0x4, scoped, tag = 'scoped memory for tpu_custom_call.1']
    #allocation4 [shape = 's32[1]{0}', space=sflag, size = 0x4, scoped, tag = 'scoped memory for tpu_custom_call.1']
    #allocation5 [shape = 'u8[8192]{0}', space=vmem, size = 0x2000, scoped, tag = 'input window, operand 1, single buffered']
    #allocation6 [shape = 's32[1]{0}', space=sflag, size = 0x4, scoped, tag = 'scoped memory for tpu_custom_call.1']
    #allocation7 [shape = 'u8[16384]{0}', space=vmem, size = 0x4000, scoped, tag = 'input window, operand 3, single buffered']
    #allocation8 [shape = 'u8[16384]{0}', space=vmem, size = 0x4000, scoped, tag = 'input window, operand 5, single buffered']
    #allocation9 [shape = 's32[1]{0}', space=sflag, size = 0x4, scoped, tag = 'scoped memory for tpu_custom_call.1']
    #allocation10 [shape = 'u8[16384]{0}', space=vmem, size = 0x4000, scoped, tag = 'input window, operand 7, single buffered']
    #allocation11 [shape = 'u8[16384]{0}', space=vmem, size = 0x4000, scoped, tag = 'input window, operand 9, single buffered']
    #allocation12 [shape = 's32[1]{0}', space=sflag, size = 0x4, scoped, tag = 'scoped memory for tpu_custom_call.1']
    #allocation13 [shape = 'u8[16384]{0}', space=vmem, size = 0x4000, scoped, tag = 'input window, operand 11, single buffered']
    #allocation14 [shape = 'u8[8192]{0}', space=vmem, size = 0x2000, scoped, tag = 'output window, operand 0, single buffered']
    %18 = vsyncpa [#allocation3], 0
    %19 = vsyncpa [#allocation6], 0
    %20 = vsyncpa [#allocation9], 0
    %21 = vsyncpa [#allocation12], 0
    %22 = vsyncpa [#allocation4], 0
    // Predicated region
    $region2: #{tpu_custom_call.1} parent=1 // pred_check
      _
    $region3: #{tpu_custom_call.1} parent=1 // pred_check_branch
      %24 = sbr.rel (0) target = $region5
    $region4: #{tpu_custom_call.1} parent=1 // pred_region
      %26 = vsyncadd [#allocation3], 0
      %s27 = sshll.u32 %s0, 4
      %s28 = int_to_ptr.hbm [resolvable:$true] %s27
      %s29 = sshll.u32 [#allocation2], 4
      %s30 = int_to_ptr.vmem [resolvable:$true] %s29
      %35 = dma.hbm_to_vmem [thread:$0]  %s28, 256, %s30, [#allocation3], 128, 128, 8
    $region5: #{tpu_custom_call.1} parent=1 // pred_fallthru
      _
    // Predicated region
    $region6: #{tpu_custom_call.1} parent=1 // pred_check
      _
    $region7: #{tpu_custom_call.1} parent=1 // pred_check_branch
      %37 = sbr.rel (0) target = $region9
    $region8: #{tpu_custom_call.1} parent=1 // pred_region
      %39 = vsyncadd [#allocation6], 0
      %s40 = sshll.u32 %s1, 4
      %s41 = int_to_ptr.hbm [resolvable:$true] %s40
      %s42 = sshll.u32 [#allocation5], 4
      %s43 = int_to_ptr.vmem [resolvable:$true] %s42
      %48 = dma.hbm_to_vmem [thread:$0]  %s41, 256, %s43, [#allocation6], 64, 64, 4
    $region9: #{tpu_custom_call.1} parent=1 // pred_fallthru
      _
    // Predicated region
    $region10: #{tpu_custom_call.1} parent=1 // pred_check
      _
    $region11: #{tpu_custom_call.1} parent=1 // pred_check_branch
      %50 = sbr.rel (0) target = $region13
    $region12: #{tpu_custom_call.1} parent=1 // pred_region
      _
    $region13: #{tpu_custom_call.1} parent=1 // pred_fallthru
      _
    // Predicated region
    $region14: #{tpu_custom_call.1} parent=1 // pred_check
      _
    $region15: #{tpu_custom_call.1} parent=1 // pred_check_branch
      %52 = sbr.rel (0) target = $region17
    $region16: #{tpu_custom_call.1} parent=1 // pred_region
      %54 = vsyncadd [#allocation6], 0
      %s55 = sshll.u32 %s3, 4
      %s56 = int_to_ptr.hbm [resolvable:$true] %s55
      %s57 = sshll.u32 [#allocation7], 4
      %s58 = int_to_ptr.vmem [resolvable:$true] %s57
      %63 = dma.hbm_to_vmem [thread:$0]  %s56, 512, %s58, [#allocation6], 64, 64, 4
    $region17: #{tpu_custom_call.1} parent=1 // pred_fallthru
      _
    // Predicated region
    $region18: #{tpu_custom_call.1} parent=1 // pred_check
      _
    $region19: #{tpu_custom_call.1} parent=1 // pred_check_branch
      %65 = sbr.rel (0) target = $region21
    $region20: #{tpu_custom_call.1} parent=1 // pred_region
      _
    $region21: #{tpu_custom_call.1} parent=1 // pred_fallthru
      _
    // Predicated region
    $region22: #{tpu_custom_call.1} parent=1 // pred_check
      _
    $region23: #{tpu_custom_call.1} parent=1 // pred_check_branch
      %67 = sbr.rel (0) target = $region25
    $region24: #{tpu_custom_call.1} parent=1 // pred_region
      %69 = vsyncadd [#allocation9], 0
      %s70 = sshll.u32 %s5, 4
      %s71 = int_to_ptr.hbm [resolvable:$true] %s70
      %s72 = sshll.u32 [#allocation8], 4
      %s73 = int_to_ptr.vmem [resolvable:$true] %s72
      %78 = dma.hbm_to_vmem [thread:$0]  %s71, 512, %s73, [#allocation9], 64, 64, 4
    $region25: #{tpu_custom_call.1} parent=1 // pred_fallthru
      _
    // Predicated region
    $region26: #{tpu_custom_call.1} parent=1 // pred_check
      _
    $region27: #{tpu_custom_call.1} parent=1 // pred_check_branch
      %80 = sbr.rel (0) target = $region29
    $region28: #{tpu_custom_call.1} parent=1 // pred_region
      _
    $region29: #{tpu_custom_call.1} parent=1 // pred_fallthru
      _
    // Predicated region
    $region30: #{tpu_custom_call.1} parent=1 // pred_check
      _
    $region31: #{tpu_custom_call.1} parent=1 // pred_check_branch
      %82 = sbr.rel (0) target = $region33
    $region32: #{tpu_custom_call.1} parent=1 // pred_region
      %84 = vsyncadd [#allocation9], 0
      %s85 = sshll.u32 %s7, 4
      %s86 = int_to_ptr.hbm [resolvable:$true] %s85
      %s87 = sshll.u32 [#allocation10], 4
      %s88 = int_to_ptr.vmem [resolvable:$true] %s87
      %93 = dma.hbm_to_vmem [thread:$0]  %s86, 512, %s88, [#allocation9], 64, 64, 4
    $region33: #{tpu_custom_call.1} parent=1 // pred_fallthru
      _
    // Predicated region
    $region34: #{tpu_custom_call.1} parent=1 // pred_check
      _
    $region35: #{tpu_custom_call.1} parent=1 // pred_check_branch
      %95 = sbr.rel (0) target = $region37
    $region36: #{tpu_custom_call.1} parent=1 // pred_region
      _
    $region37: #{tpu_custom_call.1} parent=1 // pred_fallthru
      _
    // Predicated region
    $region38: #{tpu_custom_call.1} parent=1 // pred_check
      _
    $region39: #{tpu_custom_call.1} parent=1 // pred_check_branch
      %97 = sbr.rel (0) target = $region41
    $region40: #{tpu_custom_call.1} parent=1 // pred_region
      %99 = vsyncadd [#allocation12], 0
      %s100 = sshll.u32 %s9, 4
      %s101 = int_to_ptr.hbm [resolvable:$true] %s100
      %s102 = sshll.u32 [#allocation11], 4
      %s103 = int_to_ptr.vmem [resolvable:$true] %s102
      %108 = dma.hbm_to_vmem [thread:$0]  %s101, 512, %s103, [#allocation12], 64, 64, 4
    $region41: #{tpu_custom_call.1} parent=1 // pred_fallthru
      _
    // Predicated region
    $region42: #{tpu_custom_call.1} parent=1 // pred_check
      _
    $region43: #{tpu_custom_call.1} parent=1 // pred_check_branch
      %110 = sbr.rel (0) target = $region45
    $region44: #{tpu_custom_call.1} parent=1 // pred_region
      _
    $region45: #{tpu_custom_call.1} parent=1 // pred_fallthru
      _
    // Predicated region
    $region46: #{tpu_custom_call.1} parent=1 // pred_check
      _
    $region47: #{tpu_custom_call.1} parent=1 // pred_check_branch
      %112 = sbr.rel (0) target = $region49
    $region48: #{tpu_custom_call.1} parent=1 // pred_region
      %114 = vsyncadd [#allocation12], 0
      %s115 = sshll.u32 %s11, 4
      %s116 = int_to_ptr.hbm [resolvable:$true] %s115
      %s117 = sshll.u32 [#allocation13], 4
      %s118 = int_to_ptr.vmem [resolvable:$true] %s117
      %123 = dma.hbm_to_vmem [thread:$0]  %s116, 512, %s118, [#allocation12], 64, 64, 4
    $region49: #{tpu_custom_call.1} parent=1 // pred_fallthru
      _
    // Predicated region
    $region50: #{tpu_custom_call.1} parent=1 // pred_check
      _
    $region51: #{tpu_custom_call.1} parent=1 // pred_check_branch
      %125 = sbr.rel (0) target = $region53
    $region52: #{tpu_custom_call.1} parent=1 // pred_region
      _
    $region53: #{tpu_custom_call.1} parent=1 // pred_fallthru
      _
    // Predicated region
    $region54: #{tpu_custom_call.1} parent=1 // pred_check
      _
    $region55: #{tpu_custom_call.1} parent=1 // pred_check_branch
      %127 = sbr.rel (0) target = $region57
    $region56: #{tpu_custom_call.1} parent=1 // pred_region
      %129 = dma.done [#allocation3], 256
    $region57: #{tpu_custom_call.1} parent=1 // pred_fallthru
      _
    // Predicated region
    $region58: #{tpu_custom_call.1} parent=1 // pred_check
      _
    $region59: #{tpu_custom_call.1} parent=1 // pred_check_branch
      %131 = sbr.rel (0) target = $region61
    $region60: #{tpu_custom_call.1} parent=1 // pred_region
      %133 = dma.done [#allocation6], 256
    $region61: #{tpu_custom_call.1} parent=1 // pred_fallthru
      _
    // Predicated region
    $region62: #{tpu_custom_call.1} parent=1 // pred_check
      _
    $region63: #{tpu_custom_call.1} parent=1 // pred_check_branch
      %135 = sbr.rel (0) target = $region65
    $region64: #{tpu_custom_call.1} parent=1 // pred_region
      %137 = dma.done [#allocation6], 512
    $region65: #{tpu_custom_call.1} parent=1 // pred_fallthru
      _
    // Predicated region
    $region66: #{tpu_custom_call.1} parent=1 // pred_check
      _
    $region67: #{tpu_custom_call.1} parent=1 // pred_check_branch
      %139 = sbr.rel (0) target = $region69
    $region68: #{tpu_custom_call.1} parent=1 // pred_region
      %141 = dma.done [#allocation9], 512
    $region69: #{tpu_custom_call.1} parent=1 // pred_fallthru
      _
    // Predicated region
    $region70: #{tpu_custom_call.1} parent=1 // pred_check
      _
    $region71: #{tpu_custom_call.1} parent=1 // pred_check_branch
      %143 = sbr.rel (0) target = $region73
    $region72: #{tpu_custom_call.1} parent=1 // pred_region
      %145 = dma.done [#allocation9], 512
    $region73: #{tpu_custom_call.1} parent=1 // pred_fallthru
      _
    // Predicated region
    $region74: #{tpu_custom_call.1} parent=1 // pred_check
      _
    $region75: #{tpu_custom_call.1} parent=1 // pred_check_branch
      %147 = sbr.rel (0) target = $region77
    $region76: #{tpu_custom_call.1} parent=1 // pred_region
      %149 = dma.done [#allocation12], 512
    $region77: #{tpu_custom_call.1} parent=1 // pred_fallthru
      _
    // Predicated region
    $region78: #{tpu_custom_call.1} parent=1 // pred_check
      _
    $region79: #{tpu_custom_call.1} parent=1 // pred_check_branch
      %151 = sbr.rel (0) target = $region81
    $region80: #{tpu_custom_call.1} parent=1 // pred_region
      %153 = dma.done [#allocation12], 512
    $region81: #{tpu_custom_call.1} parent=1 // pred_fallthru
      _
    %v155 = vld [vmem:[#allocation2] sm:$0xff]
    %v156 = vld [vmem:[#allocation2 + $0x8] sm:$0xff]
    %v157 = vld [vmem:[#allocation5] sm:$0xf]
    %v158 = vld [vmem:[#allocation5 + $0x4] sm:$0xf]
    %v159 = vld [vmem:[#allocation5 + $0x8] sm:$0xf]
    %v160 = vld [vmem:[#allocation5 + $0xc] sm:$0xf]
    %v161 = vld [vmem:[%s2] sm:$0x1]
    %v162 = vld [vmem:[#allocation7] sm:$0xf]
    %v163 = vld [vmem:[#allocation7 + $0x4] sm:$0xf]
    %v164 = vld [vmem:[#allocation7 + $0x8] sm:$0xf]
    %v165 = vld [vmem:[#allocation7 + $0xc] sm:$0xf]
    %v166 = vld [vmem:[#allocation7 + $0x10] sm:$0xf]
    %v167 = vld [vmem:[#allocation7 + $0x14] sm:$0xf]
    %v168 = vld [vmem:[#allocation7 + $0x18] sm:$0xf]
    %v169 = vld [vmem:[#allocation7 + $0x1c] sm:$0xf]
    %v170 = vld [vmem:[%s4] sm:$0x1]
    %v171 = vld [vmem:[#allocation8] sm:$0xf]
    %v172 = vld [vmem:[#allocation8 + $0x4] sm:$0xf]
    %v173 = vld [vmem:[#allocation8 + $0x8] sm:$0xf]
    %v174 = vld [vmem:[#allocation8 + $0xc] sm:$0xf]
    %v175 = vld [vmem:[#allocation8 + $0x10] sm:$0xf]
    %v176 = vld [vmem:[#allocation8 + $0x14] sm:$0xf]
    %v177 = vld [vmem:[#allocation8 + $0x18] sm:$0xf]
    %v178 = vld [vmem:[#allocation8 + $0x1c] sm:$0xf]
    %v179 = vld [vmem:[%s6] sm:$0x1]
    %v180 = vld [vmem:[#allocation10] sm:$0xf]
    %v181 = vld [vmem:[#allocation10 + $0x4] sm:$0xf]
    %v182 = vld [vmem:[#allocation10 + $0x8] sm:$0xf]
    %v183 = vld [vmem:[#allocation10 + $0xc] sm:$0xf]
    %v184 = vld [vmem:[#allocation10 + $0x10] sm:$0xf]
    %v185 = vld [vmem:[#allocation10 + $0x14] sm:$0xf]
    %v186 = vld [vmem:[#allocation10 + $0x18] sm:$0xf]
    %v187 = vld [vmem:[#allocation10 + $0x1c] sm:$0xf]
    %v188 = vld [vmem:[%s8] sm:$0x1]
    %v189 = vld [vmem:[#allocation11] sm:$0xf]
    %v190 = vld [vmem:[#allocation11 + $0x4] sm:$0xf]
    %v191 = vld [vmem:[#allocation11 + $0x8] sm:$0xf]
    %v192 = vld [vmem:[#allocation11 + $0xc] sm:$0xf]
    %v193 = vld [vmem:[#allocation11 + $0x10] sm:$0xf]
    %v194 = vld [vmem:[#allocation11 + $0x14] sm:$0xf]
    %v195 = vld [vmem:[#allocation11 + $0x18] sm:$0xf]
    %v196 = vld [vmem:[#allocation11 + $0x1c] sm:$0xf]
    %v197 = vld [vmem:[%s10] sm:$0x1]
    %v198 = vld [vmem:[#allocation13] sm:$0xf]
    %v199 = vld [vmem:[#allocation13 + $0x4] sm:$0xf]
    %v200 = vld [vmem:[#allocation13 + $0x8] sm:$0xf]
    %v201 = vld [vmem:[#allocation13 + $0xc] sm:$0xf]
    %v202 = vld [vmem:[#allocation13 + $0x10] sm:$0xf]
    %v203 = vld [vmem:[#allocation13 + $0x14] sm:$0xf]
    %v204 = vld [vmem:[#allocation13 + $0x18] sm:$0xf]
    %v205 = vld [vmem:[#allocation13 + $0x1c] sm:$0xf]
    %v206 = vld [vmem:[%s12] sm:$0x1]
    %v207 = vpack.c.bf16 %v156, %v155
    %v209 = vperm.slane %v161, 0
    %v215 = vunpack.c.l.b16 %v157
    %v216 = vunpack.c.l.b16 %v158
    %v217 = vunpack.c.l.b16 %v159
    %v218 = vunpack.c.l.b16 %v160
    %v219 = vpack.c.b16 %v216, %v215
    %v220 = vpack.c.b16 %v218, %v217
    %vm223 = vcmask 261120
    %v225 = vsel %vm223, %v207, 0
    %227 = vmatpush.bf16.msra.mxu0 0
    %228 = vmatpush.bf16.msra.mxu0 0
    %229 = vmatpush.bf16.msra.mxu0 0
    %230 = vmatpush.bf16.msra.mxu0 0
    %231 = vmatpush.bf16.msra.mxu0 0
    %232 = vmatpush.bf16.msra.mxu0 0
    %233 = vmatpush.bf16.msra.mxu0 %v220
    %234 = vmatpush.bf16.msra.mxu0 %v219
    %235 = vmatmul.bf16.gmra.mxu0 %v225
    %v236 = vpop.f32.mrf.mxu0
    %v237 = vadd.f32 %v209, %v236
    %v238 = vpop.f32.mrf.mxu0
    %v239 = vadd.f32 %v209, %v238
    %240 = vdwg.mxu0
    %vm241 = vcmp.gt.f32.partialorder %v237, 0.0
    %vm242 = vcmp.gt.f32.partialorder %v239, 0.0
    %v243 = vmul.f32 %v237, 1.442695
    %v244 = vpow.pop %v243
    %v245 = vmul.f32 %v239, 1.442695
    %v246 = vpow.pop %v245
    %v247 = vsub.f32 %v244, 1.0
    %v248 = vsub.f32 %v246, 1.0
    %v249 = vsel %vm241, %v237, %v247
    %v250 = vsel %vm242, %v239, %v248
    %v251 = vpack.c.bf16 %v250, %v249
    %v253 = vperm.slane %v170, 0
    %v263 = vunpack.c.l.b16 %v162
    %v264 = vunpack.c.l.b16 %v163
    %v265 = vunpack.c.l.b16 %v164
    %v266 = vunpack.c.l.b16 %v165
    %v267 = vunpack.c.l.b16 %v166
    %v268 = vunpack.c.l.b16 %v167
    %v269 = vunpack.c.l.b16 %v168
    %v270 = vunpack.c.l.b16 %v169
    %v271 = vpack.c.b16 %v264, %v263
    %v272 = vpack.c.b16 %v266, %v265
    %v273 = vpack.c.b16 %v268, %v267
    %v274 = vpack.c.b16 %v270, %v269
    %vm279 = vcmask 523264
    %v281 = vsel %vm279, %v251, 0
    %283 = vmatpush.bf16.msra.mxu0 0
    %284 = vmatpush.bf16.msra.mxu0 0
    %285 = vmatpush.bf16.msra.mxu0 0
    %286 = vmatpush.bf16.msra.mxu0 0
    %287 = vmatpush.bf16.msra.mxu0 %v274
    %288 = vmatpush.bf16.msra.mxu0 %v273
    %289 = vmatpush.bf16.msra.mxu0 %v272
    %290 = vmatpush.bf16.msra.mxu0 %v271
    %291 = vmatmul.bf16.gmra.mxu0 %v281
    %v292 = vpop.f32.mrf.mxu0
    %v293 = vadd.f32 %v253, %v292
    %v294 = vpop.f32.mrf.mxu0
    %v295 = vadd.f32 %v253, %v294
    %296 = vdwg.mxu0
    %vm297 = vcmp.gt.f32.partialorder %v293, 0.0
    %vm298 = vcmp.gt.f32.partialorder %v295, 0.0
    %v299 = vmul.f32 %v293, 1.442695
    %v300 = vpow.pop %v299
    %v301 = vmul.f32 %v295, 1.442695
    %v302 = vpow.pop %v301
    %v303 = vsub.f32 %v300, 1.0
    %v304 = vsub.f32 %v302, 1.0
    %v305 = vsel %vm297, %v293, %v303
    %v306 = vsel %vm298, %v295, %v304
    %v307 = vpack.c.bf16 %v306, %v305
    %v309 = vperm.slane %v179, 0
    %v319 = vunpack.c.l.b16 %v171
    %v320 = vunpack.c.l.b16 %v172
    %v321 = vunpack.c.l.b16 %v173
    %v322 = vunpack.c.l.b16 %v174
    %v323 = vunpack.c.l.b16 %v175
    %v324 = vunpack.c.l.b16 %v176
    %v325 = vunpack.c.l.b16 %v177
    %v326 = vunpack.c.l.b16 %v178
    %v327 = vpack.c.b16 %v320, %v319
    %v328 = vpack.c.b16 %v322, %v321
    %v329 = vpack.c.b16 %v324, %v323
    %v330 = vpack.c.b16 %v326, %v325
    %v336 = vsel %vm279, %v307, 0
    %338 = vmatpush.bf16.msra.mxu0 0
    %339 = vmatpush.bf16.msra.mxu0 0
    %340 = vmatpush.bf16.msra.mxu0 0
    %341 = vmatpush.bf16.msra.mxu0 0
    %342 = vmatpush.bf16.msra.mxu0 %v330
    %343 = vmatpush.bf16.msra.mxu0 %v329
    %344 = vmatpush.bf16.msra.mxu0 %v328
    %345 = vmatpush.bf16.msra.mxu0 %v327
    %346 = vmatmul.bf16.gmra.mxu0 %v336
    %v347 = vpop.f32.mrf.mxu0
    %v348 = vadd.f32 %v309, %v347
    %v349 = vpop.f32.mrf.mxu0
    %v350 = vadd.f32 %v309, %v349
    %351 = vdwg.mxu0
    %v352 = vand.u32 2147483647, %v348
    %v353 = vand.u32 2147483647, %v350
    %v354 = vsel %vm279, %v352, 0.0
    %355 = vadd.xlane.f32.xlu0 %v354
    %v356 = vpop.xlane.xlu0 %355
    %v357 = vsel %vm279, %v353, 0.0
    %358 = vadd.xlane.f32.xlu0 %v357
    %v359 = vpop.xlane.xlu0 %358
    %v360 = vrcp.pop 64.0
    %v361 = vmul.f32 64.0, %v360
    %v362 = vsub.f32 1.0, %v361
    %v363 = vmul.f32 %v360, %v362
    %v364 = vadd.f32 %v360, %v363
    %vm365 = vweird.f32 %v360
    %v366 = vsel %vm365, %v360, %v364
    %v367 = vmul.f32 %v356, %v366
    %v368 = vmul.f32 %v359, %v366
    %v369 = vmax.f32 %v367, 1e-08
    %v370 = vmax.f32 %v368, 1e-08
    %v371 = vrcp.pop %v369
    %v372 = vrcp.pop %v370
    %v373 = vmul.f32 %v348, %v371
    %v374 = vmul.f32 %v350, %v372
    %v375 = vpack.c.bf16 %v374, %v373
    %v377 = vperm.slane %v188, 0
    %v387 = vunpack.c.l.b16 %v180
    %v388 = vunpack.c.l.b16 %v181
    %v389 = vunpack.c.l.b16 %v182
    %v390 = vunpack.c.l.b16 %v183
    %v391 = vunpack.c.l.b16 %v184
    %v392 = vunpack.c.l.b16 %v185
    %v393 = vunpack.c.l.b16 %v186
    %v394 = vunpack.c.l.b16 %v187
    %v395 = vpack.c.b16 %v388, %v387
    %v396 = vpack.c.b16 %v390, %v389
    %v397 = vpack.c.b16 %v392, %v391
    %v398 = vpack.c.b16 %v394, %v393
    %v404 = vsel %vm279, %v375, 0
    %406 = vmatpush.bf16.msra.mxu0 0
    %407 = vmatpush.bf16.msra.mxu0 0
    %408 = vmatpush.bf16.msra.mxu0 0
    %409 = vmatpush.bf16.msra.mxu0 0
    %410 = vmatpush.bf16.msra.mxu0 %v398
    %411 = vmatpush.bf16.msra.mxu0 %v397
    %412 = vmatpush.bf16.msra.mxu0 %v396
    %413 = vmatpush.bf16.msra.mxu0 %v395
    %414 = vmatmul.bf16.gmra.mxu0 %v404
    %v415 = vpop.f32.mrf.mxu0
    %v416 = vadd.f32 %v377, %v415
    %v417 = vpop.f32.mrf.mxu0
    %v418 = vadd.f32 %v377, %v417
    %419 = vdwg.mxu0
    %v420 = vmax.f32 %v416, 0.0
    %v421 = vmax.f32 %v418, 0.0
    %v422 = vpack.c.bf16 %v421, %v420
    %v424 = vperm.slane %v197, 0
    %v434 = vunpack.c.l.b16 %v189
    %v435 = vunpack.c.l.b16 %v190
    %v436 = vunpack.c.l.b16 %v191
    %v437 = vunpack.c.l.b16 %v192
    %v438 = vunpack.c.l.b16 %v193
    %v439 = vunpack.c.l.b16 %v194
    %v440 = vunpack.c.l.b16 %v195
    %v441 = vunpack.c.l.b16 %v196
    %v442 = vpack.c.b16 %v435, %v434
    %v443 = vpack.c.b16 %v437, %v436
    %v444 = vpack.c.b16 %v439, %v438
    %v445 = vpack.c.b16 %v441, %v440
    %v451 = vsel %vm279, %v422, 0
    %453 = vmatpush.bf16.msra.mxu0 0
    %454 = vmatpush.bf16.msra.mxu0 0
    %455 = vmatpush.bf16.msra.mxu0 0
    %456 = vmatpush.bf16.msra.mxu0 0
    %457 = vmatpush.bf16.msra.mxu0 %v445
    %458 = vmatpush.bf16.msra.mxu0 %v444
    %459 = vmatpush.bf16.msra.mxu0 %v443
    %460 = vmatpush.bf16.msra.mxu0 %v442
    %461 = vmatmul.bf16.gmra.mxu0 %v451
    %v462 = vpop.f32.mrf.mxu0
    %v463 = vadd.f32 %v424, %v462
    %v464 = vpop.f32.mrf.mxu0
    %v465 = vadd.f32 %v424, %v464
    %466 = vdwg.mxu0
    %v467 = vmax.f32 %v463, 0.0
    %v468 = vmax.f32 %v465, 0.0
    %v469 = vpack.c.bf16 %v468, %v467
    %v471 = vperm.slane %v206, 0
    %v481 = vunpack.c.l.b16 %v198
    %v482 = vunpack.c.l.b16 %v199
    %v483 = vunpack.c.l.b16 %v200
    %v484 = vunpack.c.l.b16 %v201
    %v485 = vunpack.c.l.b16 %v202
    %v486 = vunpack.c.l.b16 %v203
    %v487 = vunpack.c.l.b16 %v204
    %v488 = vunpack.c.l.b16 %v205
    %v489 = vpack.c.b16 %v482, %v481
    %v490 = vpack.c.b16 %v484, %v483
    %v491 = vpack.c.b16 %v486, %v485
    %v492 = vpack.c.b16 %v488, %v487
    %v498 = vsel %vm279, %v469, 0
    %500 = vmatpush.bf16.msra.mxu0 0
    %501 = vmatpush.bf16.msra.mxu0 0
    %502 = vmatpush.bf16.msra.mxu0 0
    %503 = vmatpush.bf16.msra.mxu0 0
    %504 = vmatpush.bf16.msra.mxu0 %v492
    %505 = vmatpush.bf16.msra.mxu0 %v491
    %506 = vmatpush.bf16.msra.mxu0 %v490
    %507 = vmatpush.bf16.msra.mxu0 %v489
    %508 = vmatmul.bf16.gmra.mxu0 %v498
    %v509 = vpop.f32.mrf.mxu0
    %v510 = vadd.f32 %v471, %v509
    %v511 = vpop.f32.mrf.mxu0
    %v512 = vadd.f32 %v471, %v511
    %513 = vdwg.mxu0
    %v514 = vtanh.pop %v510
    %v515 = vtanh.pop %v512
    %v516 = vmax.f32 %v514, -1.0
    %v517 = vmax.f32 %v515, -1.0
    %v518 = vmin.f32 %v516, 1.0
    %v519 = vmin.f32 %v517, 1.0
    %520 = vst [vmem:[#allocation14] sm:$0xff] %v518
    %521 = vst [vmem:[#allocation14 + $0x8] sm:$0xff] %v519
    // Predicated region
    $region82: #{tpu_custom_call.1} parent=1 // pred_check
      _
    $region83: #{tpu_custom_call.1} parent=1 // pred_check_branch
      %523 = sbr.rel (0) target = $region85
    $region84: #{tpu_custom_call.1} parent=1 // pred_region
      %525 = vsyncadd [#allocation4], 0
      %s526 = sshll.u32 [#allocation14], 4
      %s527 = int_to_ptr.vmem [resolvable:$true] %s526
      %s528 = sshll.u32 %s13, 4
      %s529 = int_to_ptr.hbm [resolvable:$true] %s528
      %534 = dma.vmem_to_hbm [thread:$0]  %s527, 256, %s529, [#allocation4], 128, 128, 8
    $region85: #{tpu_custom_call.1} parent=1 // pred_fallthru
      _
    // Predicated region
    $region86: #{tpu_custom_call.1} parent=1 // pred_check
      _
    $region87: #{tpu_custom_call.1} parent=1 // pred_check_branch
      %536 = sbr.rel (0) target = $region89
    $region88: #{tpu_custom_call.1} parent=1 // pred_region
      %538 = dma.done [#allocation4], 256
    $region89: #{tpu_custom_call.1} parent=1 // pred_fallthru
      _
    %539 = vsyncpa [#allocation3], 1
    %540 = vsyncpa [#allocation6], 1
    %541 = vsyncpa [#allocation9], 1
    %542 = vsyncpa [#allocation12], 1
    %543 = vsyncpa [#allocation4], 1

</llo_original>
